<compile_context>
chip_gen: v7x
topology: tpu7x:2x2x1
jax: 0.10.0
libtpu: 0.0.40
codegen_flags: <defaults>
</compile_context>

<pallas_src>
import jax
import jax.numpy as jnp
from jax.experimental import pallas as pl
from jax.experimental.pallas import tpu as pltpu


def _gelu_tanh(x):
    # tanh-approx GELU (matches torch.nn.GELU(approximate='tanh')).
    # TODO(synk): if Default_FNN uses the default exact erf GELU, swap in the erf form here and
    # in _reference_loss.
    c = 0.7978845608028654  # sqrt(2/pi)
    return 0.5 * x * (1.0 + jnp.tanh(c * (x + 0.044715 * x * x * x)))


def _round_up(x, m):
    return (x + m - 1) // m * m


def _cdiv(a, b):
    return -(-a // b)


def _make_kernel(tm_rows, n_rows):
    def kernel(x_ref, wts_ref, w1_ref, b1_ref, dw2_ref, db2_ref, out_ref):
        # fc1 on the MXU in bf16 with f32 accumulation; bias + tanh-GELU on VPU/EUP.
        x = x_ref[...]                                                    # (TM, H) bf16
        h = jnp.dot(x, w1_ref[...], preferred_element_type=jnp.float32) + b1_ref[...]
        h = _gelu_tanh(h)                                                 # (TM, Hp) f32
        # 2-class head as a logit difference: VPU multiply + XLU lane reduction (MXU stays free).
        d = jnp.sum(h * dw2_ref[...], axis=-1, keepdims=True) + db2_ref[0, 0]   # (TM, 1)
        # Mask rows past the true row count: the last x tile may contain undefined data.
        row = pl.program_id(0) * tm_rows + jax.lax.broadcasted_iota(jnp.int32, d.shape, 0)
        d = jnp.where(row < n_rows, d, 0.0)
        # Per-row weights a = tm+pm, c = a*label (packed into one bf16 array; exact for {0,1,2}).
        wts = wts_ref[...].astype(jnp.float32)                            # (TM, 2)
        a = wts[:, 0:1]
        c = wts[:, 1:2]
        # -log_softmax(z)[label] == softplus(d) - label*d   (stable softplus).
        sp = jnp.maximum(d, 0.0) + jnp.log(1.0 + jnp.exp(-jnp.abs(d)))
        partial = jnp.sum(a * sp - c * d)
        # Lane-dense partial-loss slab: one unmasked vreg store per tile.
        out_ref[...] = jnp.broadcast_to(partial, out_ref.shape)
    return kernel


def sequence_tag_head_loss(input_vec, table_mask, paragraph_mask, labels, params,
                           *, block_rows=2048):
    """SequenceTagHead forward loss as a single row-tiled Pallas call."""
    B, S, H = input_vec.shape
    N = B * S
    w1, b1, w2, b2 = params

    # Activations: always feed the MXU bf16 (f32 accumulation); no row-padding copy of x.
    x = input_vec.reshape(N, H).astype(jnp.bfloat16)

    # ---- row tiling ------------------------------------------------------------------
    Hp = _round_up(H, 128)                        # lane-align fc1 output dim (weights only)
    # Keep the bf16 x tile <= ~8 MiB so double buffers + f32 scratch fit v7x's 64 MiB VMEM.
    block_rows_eff = max(128, min(block_rows, (8 << 20) // max(1, 2 * Hp)))
    num_tiles = max(1, 2 * _cdiv(N, 2 * block_rows_eff))   # even -> both v7x TCs get work
    tm_rows = _round_up(_cdiv(N, num_tiles), 16)
    tm_rows = min(tm_rows, _round_up(N, 8))
    num_tiles = _cdiv(N, tm_rows)                          # drop empty trailing tiles
    n_pad = num_tiles * tm_rows

    # ---- per-row side weights, packed: a = tm+pm, c = a*label -------------------------
    # labels are assumed to be in {0, 1} (same assumption the torch NLLLoss(2-class) makes).
    a_w = (table_mask.reshape(N).astype(jnp.float32)
           + paragraph_mask.reshape(N).astype(jnp.float32))
    c_w = a_w * labels.reshape(N).astype(jnp.float32)
    wts = jnp.stack([a_w, c_w], axis=-1).astype(jnp.bfloat16)    # values {0,1,2}: exact in bf16
    wts = jnp.pad(wts, ((0, n_pad - N), (0, 0)))                 # tiny array; negligible cost

    # ---- parameters: fold the 2-class head into a logit-difference row vector ----------
    w1c = w1.astype(jnp.bfloat16)
    b1r = b1.reshape(1, H).astype(jnp.float32)
    dw2 = (w2[:, 1] - w2[:, 0]).reshape(1, H).astype(jnp.float32)
    if Hp != H:                                   # one-time weight padding; padded cols give 0
        w1c = jnp.pad(w1c, ((0, 0), (0, Hp - H)))
        b1r = jnp.pad(b1r, ((0, 0), (0, Hp - H)))
        dw2 = jnp.pad(dw2, ((0, 0), (0, Hp - H)))
    db2 = (b2[1] - b2[0]).reshape(1, 1).astype(jnp.float32)      # scalar -> SMEM

    # ---- cost hint and VMEM budget ------------------------------------------------------
    flops = 2 * n_pad * H * Hp + 2 * n_pad * Hp
    transcendentals = n_pad * Hp + n_pad
    bytes_accessed = (N * H * 2 + H * Hp * 2 + n_pad * 128 * 2
                      + 2 * 8 * Hp * 4 + num_tiles * 8 * 128 * 4)
    tm16 = _round_up(tm_rows, 16)
    est_vmem = (2 * tm16 * Hp * 2                 # x double buffer (bf16, lane padded)
                + 2 * tm16 * 128 * 2              # packed weights double buffer (bf16, padded)
                + 2 * _round_up(H, 16) * Hp * 2   # w1 double buffer (bf16)
                + 4 * 8 * Hp * 4                  # b1 + dw2 (f32)
                + 2 * tm_rows * Hp * 4            # f32 intermediates (h + fused epilogue temp)
                + 2 * 8 * 128 * 4                 # output slab double buffer
                + (1 << 20))                      # Mosaic internal scratch headroom
    vmem_limit = int(min(max(est_vmem * 3 // 2, 4 << 20), 48 << 20))

    kernel = _make_kernel(tm_rows, N)
    # TODO(synk): single-buffer the resident w1/b1/dw2 blocks (pl.Buffered(1)) once pipeline_mode
    # is supported for top-level TPU pallas_call BlockSpecs.
    partials = pl.pallas_call(
        kernel,
        out_shape=jax.ShapeDtypeStruct((num_tiles, 8, 128), jnp.float32),
        grid=(num_tiles,),
        in_specs=[
            pl.BlockSpec((tm_rows, H), lambda i: (i, 0)),        # x row tile (pipelined)
            pl.BlockSpec((tm_rows, 2), lambda i: (i, 0)),        # packed (a, c) weights
            pl.BlockSpec((H, Hp), lambda i: (0, 0)),             # w1 (resident)
            pl.BlockSpec((1, Hp), lambda i: (0, 0)),             # b1 (resident)
            pl.BlockSpec((1, Hp), lambda i: (0, 0)),             # w2 column diff (resident)
            pl.BlockSpec(memory_space=pltpu.MemorySpace.SMEM),   # b2 diff scalar
        ],
        out_specs=pl.BlockSpec((1, 8, 128), lambda i: (i, 0, 0)),
        compiler_params=pltpu.CompilerParams(
            dimension_semantics=("parallel",),                   # row tiles shard across TCs
            vmem_limit_bytes=vmem_limit,
        ),
        cost_estimate=pl.CostEstimate(
            flops=int(flops), transcendentals=int(transcendentals),
            bytes_accessed=int(bytes_accessed)),
    )(x, wts, w1c, b1r, dw2, db2)

    return jnp.sum(partials[:, 0, 0])


def _reference_loss(input_vec, table_mask, paragraph_mask, labels, params):
    # Pure-JAX mirror of the PyTorch forward (validates the algebraic rewrite).
    w1, b1, w2, b2 = params
    x = input_vec.astype(jnp.float32)

    def fnn(v):
        return _gelu_tanh(v @ w1 + b1) @ w2 + b2

    def one(mask):
        m = mask[..., None].astype(jnp.float32)
        logp = jax.nn.log_softmax(fnn(x * m), axis=-1) * m
        lbl = jnp.where(mask > 0, labels, 0)
        chosen = jnp.take_along_axis(logp, lbl[..., None], axis=-1)
        return -jnp.sum(chosen)

    return one(table_mask) + one(paragraph_mask)


if __name__ == "__main__":
    B, S, H = 2, 9, 32
    key = jax.random.PRNGKey(0)
    k_x, k_w1, k_b1, k_w2, k_b2, k_m1, k_m2, k_lbl = jax.random.split(key, 8)

    input_vec = jax.random.normal(k_x, (B, S, H), dtype=jnp.float32)
    table_mask = (jax.random.uniform(k_m1, (B, S)) > 0.5).astype(jnp.int32)
    paragraph_mask = (jax.random.uniform(k_m2, (B, S)) > 0.5).astype(jnp.int32)
    labels = jax.random.randint(k_lbl, (B, S), 0, 2, dtype=jnp.int32)

    # Deterministic synthetic parameters for Default_FNN(H, H, 2, dropout).
    w1 = 0.05 * jax.random.normal(k_w1, (H, H), dtype=jnp.float32)
    b1 = 0.01 * jax.random.normal(k_b1, (H,), dtype=jnp.float32)
    w2 = 0.05 * jax.random.normal(k_w2, (H, 2), dtype=jnp.float32)
    b2 = 0.01 * jax.random.normal(k_b2, (2,), dtype=jnp.float32)
    params = (w1, b1, w2, b2)

    ref = _reference_loss(input_vec, table_mask, paragraph_mask, labels, params)

    # f32 caller (wrapper casts the MXU path to bf16 with f32 accumulation).
    loss = sequence_tag_head_loss(input_vec, table_mask, paragraph_mask, labels, params)
    loss = jax.block_until_ready(loss)
    assert jnp.allclose(loss, ref, rtol=3e-2, atol=3e-2), (loss, ref)

    # bf16 caller (wrapper cast is a no-op).
    loss_bf16 = sequence_tag_head_loss(
        input_vec.astype(jnp.bfloat16), table_mask, paragraph_mask, labels, params)
    loss_bf16 = jax.block_until_ready(loss_bf16)
    assert jnp.allclose(loss_bf16, ref, rtol=3e-2, atol=3e-2), (loss_bf16, ref)

    print("KERNEL_OK")
</pallas_src>

<mosaic_0001>
module attributes {stable_mosaic.version = 11 : i64} {
  func.func @kernel(%arg0: i32, %arg1: memref<16x32xbf16, #tpu.memory_space<vmem>>, %arg2: memref<16x2xbf16, #tpu.memory_space<vmem>>, %arg3: memref<32x128xbf16, #tpu.memory_space<vmem>>, %arg4: memref<1x128xf32, #tpu.memory_space<vmem>>, %arg5: memref<1x128xf32, #tpu.memory_space<vmem>>, %arg6: memref<1x1xf32, #tpu.memory_space<smem>>, %arg7: memref<1x8x128xf32, #tpu.memory_space<vmem>>) attributes {dimension_semantics = [#tpu.dimension_semantics<parallel>], iteration_bounds = array<i64: 2>, scalar_prefetch = 0 : i64, scratch_operands = 0 : i64, tpu.core_type = #tpu.core_type<tc>, window_params = [{transform_indices = @transform_0, window_bounds = array<i64: 16, 32>}, {transform_indices = @transform_1, window_bounds = array<i64: 16, 2>}, {pipeline_mode = #tpu.pipeline_mode<synchronous>, transform_indices = @transform_2, window_bounds = array<i64: 32, 128>}, {pipeline_mode = #tpu.pipeline_mode<synchronous>, transform_indices = @transform_3, window_bounds = array<i64: 1, 128>}, {pipeline_mode = #tpu.pipeline_mode<synchronous>, transform_indices = @transform_4, window_bounds = array<i64: 1, 128>}, {transform_indices = @transform_5, window_bounds = array<i64: 1, 1>}, {transform_indices = @transform_6, window_bounds = array<i64: 1, 8, 128>}]} {
    %c0 = arith.constant 0 : index
    %c0_0 = arith.constant 0 : index
    %0 = vector.load %arg1[%c0, %c0_0] : memref<16x32xbf16, #tpu.memory_space<vmem>>, vector<16x32xbf16>
    %c0_1 = arith.constant 0 : index
    %c0_2 = arith.constant 0 : index
    %1 = vector.load %arg3[%c0_1, %c0_2] : memref<32x128xbf16, #tpu.memory_space<vmem>>, vector<32x128xbf16>
    %cst = arith.constant dense<0.000000e+00> : vector<16x128xf32>
    %2 = tpu.matmul %0, %1, %cst {dimension_numbers = #tpu.dot_dimension_numbers<[1], [0], [0], [1], [0, 0, 1, 1], [], []>} : vector<16x32xbf16>, vector<32x128xbf16>, vector<16x128xf32> -> vector<16x128xf32>
    %c0_3 = arith.constant 0 : index
    %c0_4 = arith.constant 0 : index
    %3 = vector.load %arg4[%c0_3, %c0_4] : memref<1x128xf32, #tpu.memory_space<vmem>>, vector<1x128xf32>
    %4 = vector.broadcast %3 : vector<1x128xf32> to vector<16x128xf32>
    %5 = arith.addf %2, %4 : vector<16x128xf32>
    %cst_5 = arith.constant 5.000000e-01 : f32
    %6 = vector.broadcast %cst_5 : f32 to vector<16x128xf32>
    %7 = arith.mulf %6, %5 : vector<16x128xf32>
    %cst_6 = arith.constant 4.471500e-02 : f32
    %8 = vector.broadcast %cst_6 : f32 to vector<16x128xf32>
    %9 = arith.mulf %8, %5 : vector<16x128xf32>
    %10 = arith.mulf %9, %5 : vector<16x128xf32>
    %11 = arith.mulf %10, %5 : vector<16x128xf32>
    %12 = arith.addf %5, %11 : vector<16x128xf32>
    %cst_7 = arith.constant 0.797884583 : f32
    %13 = vector.broadcast %cst_7 : f32 to vector<16x128xf32>
    %14 = arith.mulf %13, %12 : vector<16x128xf32>
    %15 = math.tanh %14 : vector<16x128xf32>
    %cst_8 = arith.constant 1.000000e+00 : f32
    %16 = vector.broadcast %cst_8 : f32 to vector<16x128xf32>
    %17 = arith.addf %16, %15 : vector<16x128xf32>
    %18 = arith.mulf %7, %17 : vector<16x128xf32>
    %c0_9 = arith.constant 0 : index
    %c0_10 = arith.constant 0 : index
    %19 = vector.load %arg5[%c0_9, %c0_10] : memref<1x128xf32, #tpu.memory_space<vmem>>, vector<1x128xf32>
    %20 = vector.broadcast %19 : vector<1x128xf32> to vector<16x128xf32>
    %21 = arith.mulf %18, %20 : vector<16x128xf32>
    %cst_11 = arith.constant dense<0.000000e+00> : vector<16xf32>
    %22 = vector.multi_reduction <add>, %21, %cst_11 [1] : vector<16x128xf32> to vector<16xf32>
    %23 = vector.shape_cast %22 : vector<16xf32> to vector<16x1xf32>
    %c0_12 = arith.constant 0 : index
    %c0_13 = arith.constant 0 : index
    %24 = memref.load %arg6[%c0_12, %c0_13] : memref<1x1xf32, #tpu.memory_space<smem>>
    %25 = vector.broadcast %24 : f32 to vector<16x1xf32>
    %26 = arith.addf %23, %25 : vector<16x1xf32>
    %c16_i32 = arith.constant 16 : i32
    %27 = arith.muli %arg0, %c16_i32 : i32
    %28 = tpu.iota {dimensions = array<i32: 0>} : vector<16x1xi32>
    %29 = vector.broadcast %27 : i32 to vector<16x1xi32>
    %30 = arith.addi %29, %28 : vector<16x1xi32>
    %c18_i32 = arith.constant 18 : i32
    %31 = vector.broadcast %c18_i32 : i32 to vector<16x1xi32>
    %32 = arith.cmpi slt, %30, %31 : vector<16x1xi32>
    %cst_14 = arith.constant 0.000000e+00 : f32
    %33 = vector.broadcast %cst_14 : f32 to vector<16x1xf32>
    %34 = arith.select %32, %26, %33 : vector<16x1xi1>, vector<16x1xf32>
    %c0_15 = arith.constant 0 : index
    %c0_16 = arith.constant 0 : index
    %35 = vector.load %arg2[%c0_15, %c0_16] : memref<16x2xbf16, #tpu.memory_space<vmem>>, vector<16x2xbf16>
    %36 = arith.extf %35 : vector<16x2xbf16> to vector<16x2xf32>
    %37 = vector.extract_strided_slice %36 {offsets = [0, 0], sizes = [16, 1], strides = [1, 1]} : vector<16x2xf32> to vector<16x1xf32>
    %38 = vector.extract_strided_slice %36 {offsets = [0, 1], sizes = [16, 1], strides = [1, 1]} : vector<16x2xf32> to vector<16x1xf32>
    %cst_17 = arith.constant 0.000000e+00 : f32
    %39 = vector.broadcast %cst_17 : f32 to vector<16x1xf32>
    %40 = arith.maximumf %34, %39 : vector<16x1xf32>
    %41 = math.absf %34 : vector<16x1xf32>
    %cst_18 = arith.constant 0.000000e+00 : f32
    %42 = vector.broadcast %cst_18 : f32 to vector<16x1xf32>
    %43 = arith.subf %42, %41 : vector<16x1xf32>
    %44 = math.exp %43 : vector<16x1xf32>
    %cst_19 = arith.constant 1.000000e+00 : f32
    %45 = vector.broadcast %cst_19 : f32 to vector<16x1xf32>
    %46 = arith.addf %45, %44 : vector<16x1xf32>
    %47 = math.log %46 : vector<16x1xf32>
    %48 = arith.addf %40, %47 : vector<16x1xf32>
    %49 = arith.mulf %37, %48 : vector<16x1xf32>
    %50 = arith.mulf %38, %34 : vector<16x1xf32>
    %51 = arith.subf %49, %50 : vector<16x1xf32>
    %52 = vector.shape_cast %51 : vector<16x1xf32> to vector<1x16x1xf32>
    %cst_20 = arith.constant dense<0.000000e+00> : vector<1xf32>
    %53 = vector.multi_reduction <add>, %52, %cst_20 [1, 2] : vector<1x16x1xf32> to vector<1xf32>
    %54 = vector.shape_cast %53 : vector<1xf32> to vector<1x1x1xf32>
    %55 = vector.extract %54[0, 0, 0] : f32 from vector<1x1x1xf32>
    %56 = vector.broadcast %55 : f32 to vector<1x8x128xf32>
    %c0_21 = arith.constant 0 : index
    %c0_22 = arith.constant 0 : index
    %c0_23 = arith.constant 0 : index
    %57 = vector.load %arg7[%c0_21, %c0_22, %c0_23] : memref<1x8x128xf32, #tpu.memory_space<vmem>>, vector<1x8x128xf32>
    tpu.vector_store %arg7[%c0_21, %c0_22, %c0_23], %56 {strides = array<i32>} : memref<1x8x128xf32, #tpu.memory_space<vmem>>, vector<1x8x128xf32>,
    return
  }
  func.func @transform_0(%arg0: i32) -> (i32, i32) {
    %c0_i32 = arith.constant 0 : i32
    %c0_i32_0 = arith.constant 0 : i32
    return %arg0, %c0_i32 : i32, i32
  }
  func.func @transform_1(%arg0: i32) -> (i32, i32) {
    %c0_i32 = arith.constant 0 : i32
    %c0_i32_0 = arith.constant 0 : i32
    return %arg0, %c0_i32 : i32, i32
  }
  func.func @transform_2(%arg0: i32) -> (i32, i32) {
    %c0_i32 = arith.constant 0 : i32
    %c0_i32_0 = arith.constant 0 : i32
    %c0_i32_1 = arith.constant 0 : i32
    return %c0_i32, %c0_i32_0 : i32, i32
  }
  func.func @transform_3(%arg0: i32) -> (i32, i32) {
    %c0_i32 = arith.constant 0 : i32
    %c0_i32_0 = arith.constant 0 : i32
    %c0_i32_1 = arith.constant 0 : i32
    return %c0_i32, %c0_i32_0 : i32, i32
  }
  func.func @transform_4(%arg0: i32) -> (i32, i32) {
    %c0_i32 = arith.constant 0 : i32
    %c0_i32_0 = arith.constant 0 : i32
    %c0_i32_1 = arith.constant 0 : i32
    return %c0_i32, %c0_i32_0 : i32, i32
  }
  func.func @transform_5(%arg0: i32) -> (i32, i32) {
    %c0_i32 = arith.constant 0 : i32
    %c0_i32_0 = arith.constant 0 : i32
    %c0_i32_1 = arith.constant 0 : i32
    return %c0_i32, %c0_i32_0 : i32, i32
  }
  func.func @transform_6(%arg0: i32) -> (i32, i32, i32) {
    %c0_i32 = arith.constant 0 : i32
    %c0_i32_0 = arith.constant 0 : i32
    %c0_i32_1 = arith.constant 0 : i32
    return %arg0, %c0_i32, %c0_i32_0 : i32, i32, i32
  }
}

</mosaic_0001>

<llo_original>
// kernel: tpu_custom_call.1
$region0: #{tpu_custom_call.1}
  #allocation0 [shape = 'u32[]', space=smem, size = 0x4, offset = 0x4, fixed_abs, tag = 'smem constant byte address 0x4 - core index']
  #allocation1 [shape = 'u32[144,128]{1,0:T(1,128)}', space=vmem, size = 0x12000, scoped, tag = 'internal scratch']
  #allocation2 [shape = 'f32[1,1]{1,0:T(1,128)S(6)}', space=smem, size = 0x200, scoped, tag = 'scoped memory for tpu_custom_call.1']
  %s0 = inlined_call_operand.vmem [shape: bf16[18,32], index: 0, kind: input, shape index: {}]
  %s1 = inlined_call_operand.vmem [shape: bf16[32,2], index: 1, kind: input, shape index: {}]
  %s2 = inlined_call_operand.vmem [shape: bf16[32,128], index: 2, kind: input, shape index: {}]
  %s3 = inlined_call_operand.vmem [shape: f32[1,128], index: 3, kind: input, shape index: {}]
  %s4 = inlined_call_operand.vmem [shape: f32[1,128], index: 4, kind: input, shape index: {}]
  %s5 = inlined_call_operand.<no memory space> [shape: f32[1,1], index: 5, kind: input, shape index: {}]
  %s6 = inlined_call_operand.hbm [shape: f32[2,8,128], index: 6, kind: output, shape index: {}]
  %s7 = sld [smem:[#allocation0]]
  $region57: #{tpu_custom_call.1} parent=0
    _
  %s9 = ssub.s32 1, %s7
  %s10 = scalar_select 0, %s9, %s7
  %11 = sst [smem:[#allocation2]] %s5
  $region1: #{tpu_custom_call.1} parent=0
    #allocation3 [shape = 'u8[8192]{0}', space=vmem, size = 0x2000, scoped, tag = 'output window, operand 0']
    #allocation4 [shape = 's32[2]{0}', space=sflag, size = 0x8, scoped, tag = 'scoped memory for tpu_custom_call.1']
    %12 = vsyncpa [#allocation4], 0
    %s13 = scalar_lea.sflag [#allocation4], 1
    %14 = vsyncpa %s13, 0
    loop: start=0, step=1, limit=4
    $region2: #{tpu_custom_call.1} parent=1 // loop_pre_header
      _
    $region3: #{tpu_custom_call.1} parent=1 // loop_header
      %s16 = sphi 0, %s20
      %p17 = scmp.ge.s32.totalorder %s16, 4
      %s26 = sphi 0, %s28
      %s29 = sphi 0, %s26
      %s30 = sphi 0, %s29
      %s46 = sphi 0, %s30
      %s52 = sphi 0, %s54
      %s55 = sphi 0, %s52
      %s56 = sphi 0, %s55
      %s72 = sphi 0, %s56
      %s76 = sphi 0, %s76
      %s78 = sphi 0, %s76
      %s79 = sphi 0, %s78
      %s93 = sphi 0, %s79
      %s97 = sphi 0, %s97
      %s99 = sphi 0, %s97
      %s100 = sphi 0, %s99
      %s114 = sphi 0, %s100
      %s118 = sphi 0, %s118
      %s120 = sphi 0, %s118
      %s121 = sphi 0, %s120
      %s135 = sphi 0, %s121
      %s139 = sphi 0, %s139
      %s141 = sphi 0, %s139
      %s142 = sphi 0, %s141
      %s156 = sphi 0, %s142
      %s162 = sphi 0, %s164
      %s165 = sphi 0, %s162
      %s166 = sphi 0, %s165
      %s182 = sphi 0, %s166
    $region4: #{tpu_custom_call.1} parent=1 // loop_header_branch
      %19 = sbr.rel (%p17) target = $region8
    $region5: #{tpu_custom_call.1} parent=1 // loop_body
      %s21 = ssub.s32 %s16, 1
      %s22 = ssub.s32 %s16, 2
      %s23 = sadd.s32 %s16, 1
      %s24 = ssub.s32 %s16, %s23
      %p25 = scmp.eq.s32.totalorder %s24, 0
      %s27 = sadd.s32 %s26, 1
      %s28 = scalar_select %p25, %s26, %s27
      %p31 = pneg %p25
      %p32 = scmp.eq.s32.totalorder %s16, 1
      %p33 = por %p31, %p32
      %p34 = scmp.ne.s32.totalorder %s26, %s29
      %p35 = scmp.eq.s32.totalorder %s16, 0
      %p36 = por %p34, %p35
      %p37 = scmp.ne.s32.totalorder %s26, %s29
      %p38 = scmp.eq.s32.totalorder %s21, 1
      %p39 = por %p37, %p38
      %p40 = scmp.ne.s32.totalorder %s29, %s30
      %p41 = scmp.eq.s32.totalorder %s21, 0
      %p42 = por %p40, %p41
      %p43 = scmp.ne.s32.totalorder %s29, %s30
      %p44 = scmp.eq.s32.totalorder %s22, 1
      %p45 = por %p43, %p44
      %p47 = scmp.ne.s32.totalorder %s30, %s46
      %p48 = scmp.eq.s32.totalorder %s22, 0
      %p49 = por %p47, %p48
      %s50 = ssub.s32 %s16, %s23
      %p51 = scmp.eq.s32.totalorder %s50, 0
      %s53 = sadd.s32 %s52, 1
      %s54 = scalar_select %p51, %s52, %s53
      %p57 = pneg %p51
      %p58 = scmp.eq.s32.totalorder %s16, 1
      %p59 = por %p57, %p58
      %p60 = scmp.ne.s32.totalorder %s52, %s55
      %p61 = scmp.eq.s32.totalorder %s16, 0
      %p62 = por %p60, %p61
      %p63 = scmp.ne.s32.totalorder %s52, %s55
      %p64 = scmp.eq.s32.totalorder %s21, 1
      %p65 = por %p63, %p64
      %p66 = scmp.ne.s32.totalorder %s55, %s56
      %p67 = scmp.eq.s32.totalorder %s21, 0
      %p68 = por %p66, %p67
      %p69 = scmp.ne.s32.totalorder %s55, %s56
      %p70 = scmp.eq.s32.totalorder %s22, 1
      %p71 = por %p69, %p70
      %p73 = scmp.ne.s32.totalorder %s56, %s72
      %p74 = scmp.eq.s32.totalorder %s22, 0
      %p75 = por %p73, %p74
      %s77 = sadd.s32 %s76, 1
      %p80 = scmp.eq.s32.totalorder %s16, 1
      %p81 = scmp.ne.s32.totalorder %s76, %s78
      %p82 = scmp.eq.s32.totalorder %s16, 0
      %p83 = por %p81, %p82
      %p84 = scmp.ne.s32.totalorder %s76, %s78
      %p85 = scmp.eq.s32.totalorder %s21, 1
      %p86 = por %p84, %p85
      %p87 = scmp.ne.s32.totalorder %s78, %s79
      %p88 = scmp.eq.s32.totalorder %s21, 0
      %p89 = por %p87, %p88
      %p90 = scmp.ne.s32.totalorder %s78, %s79
      %p91 = scmp.eq.s32.totalorder %s22, 1
      %p92 = por %p90, %p91
      %p94 = scmp.ne.s32.totalorder %s79, %s93
      %p95 = scmp.eq.s32.totalorder %s22, 0
      %p96 = por %p94, %p95
      %s98 = sadd.s32 %s97, 1
      %p101 = scmp.eq.s32.totalorder %s16, 1
      %p102 = scmp.ne.s32.totalorder %s97, %s99
      %p103 = scmp.eq.s32.totalorder %s16, 0
      %p104 = por %p102, %p103
      %p105 = scmp.ne.s32.totalorder %s97, %s99
      %p106 = scmp.eq.s32.totalorder %s21, 1
      %p107 = por %p105, %p106
      %p108 = scmp.ne.s32.totalorder %s99, %s100
      %p109 = scmp.eq.s32.totalorder %s21, 0
      %p110 = por %p108, %p109
      %p111 = scmp.ne.s32.totalorder %s99, %s100
      %p112 = scmp.eq.s32.totalorder %s22, 1
      %p113 = por %p111, %p112
      %p115 = scmp.ne.s32.totalorder %s100, %s114
      %p116 = scmp.eq.s32.totalorder %s22, 0
      %p117 = por %p115, %p116
      %s119 = sadd.s32 %s118, 1
      %p122 = scmp.eq.s32.totalorder %s16, 1
      %p123 = scmp.ne.s32.totalorder %s118, %s120
      %p124 = scmp.eq.s32.totalorder %s16, 0
      %p125 = por %p123, %p124
      %p126 = scmp.ne.s32.totalorder %s118, %s120
      %p127 = scmp.eq.s32.totalorder %s21, 1
      %p128 = por %p126, %p127
      %p129 = scmp.ne.s32.totalorder %s120, %s121
      %p130 = scmp.eq.s32.totalorder %s21, 0
      %p131 = por %p129, %p130
      %p132 = scmp.ne.s32.totalorder %s120, %s121
      %p133 = scmp.eq.s32.totalorder %s22, 1
      %p134 = por %p132, %p133
      %p136 = scmp.ne.s32.totalorder %s121, %s135
      %p137 = scmp.eq.s32.totalorder %s22, 0
      %p138 = por %p136, %p137
      %s140 = sadd.s32 %s139, 1
      %p143 = scmp.eq.s32.totalorder %s16, 1
      %p144 = scmp.ne.s32.totalorder %s139, %s141
      %p145 = scmp.eq.s32.totalorder %s16, 0
      %p146 = por %p144, %p145
      %p147 = scmp.ne.s32.totalorder %s139, %s141
      %p148 = scmp.eq.s32.totalorder %s21, 1
      %p149 = por %p147, %p148
      %p150 = scmp.ne.s32.totalorder %s141, %s142
      %p151 = scmp.eq.s32.totalorder %s21, 0
      %p152 = por %p150, %p151
      %p153 = scmp.ne.s32.totalorder %s141, %s142
      %p154 = scmp.eq.s32.totalorder %s22, 1
      %p155 = por %p153, %p154
      %p157 = scmp.ne.s32.totalorder %s142, %s156
      %p158 = scmp.eq.s32.totalorder %s22, 0
      %p159 = por %p157, %p158
      %s160 = ssub.s32 %s16, %s23
      %p161 = scmp.eq.s32.totalorder %s160, 0
      %s163 = sadd.s32 %s162, 1
      %s164 = scalar_select %p161, %s162, %s163
      %p167 = pneg %p161
      %p168 = scmp.eq.s32.totalorder %s16, 1
      %p169 = por %p167, %p168
      %p170 = scmp.ne.s32.totalorder %s162, %s165
      %p171 = scmp.eq.s32.totalorder %s16, 0
      %p172 = por %p170, %p171
      %p173 = scmp.ne.s32.totalorder %s162, %s165
      %p174 = scmp.eq.s32.totalorder %s21, 1
      %p175 = por %p173, %p174
      %p176 = scmp.ne.s32.totalorder %s165, %s166
      %p177 = scmp.eq.s32.totalorder %s21, 0
      %p178 = por %p176, %p177
      %p179 = scmp.ne.s32.totalorder %s165, %s166
      %p180 = scmp.eq.s32.totalorder %s22, 1
      %p181 = por %p179, %p180
      %p183 = scmp.ne.s32.totalorder %s166, %s182
      %p184 = scmp.eq.s32.totalorder %s22, 0
      %p185 = por %p183, %p184
      %p186 = scmp.le.s32.totalorder 1, %s16
      %p187 = scmp.lt.s32.totalorder %s16, 3
      %p188 = pnand %p186, %p187
      %p189 = pneg %p188
      // Predicated region
      $region9: #{tpu_custom_call.1} parent=5 // pred_check
        _
      $region10: #{tpu_custom_call.1} parent=5 // pred_check_branch
        %191 = sbr.rel (%p188) target = $region12
      $region11: #{tpu_custom_call.1} parent=5 // pred_region
        %s192 = ssub.s32 %s16, 1
        // Predicated region
        $region13: #{tpu_custom_call.1} parent=11 // pred_check
          %p193 = pneg %p89
        $region14: #{tpu_custom_call.1} parent=11 // pred_check_branch
          %195 = sbr.rel (%p193) target = $region16
        $region15: #{tpu_custom_call.1} parent=11 // pred_region
          _
        $region16: #{tpu_custom_call.1} parent=11 // pred_fallthru
          _
        // Predicated region
        $region17: #{tpu_custom_call.1} parent=11 // pred_check
          %p196 = pneg %p110
        $region18: #{tpu_custom_call.1} parent=11 // pred_check_branch
          %198 = sbr.rel (%p196) target = $region20
        $region19: #{tpu_custom_call.1} parent=11 // pred_region
          _
        $region20: #{tpu_custom_call.1} parent=11 // pred_fallthru
          _
        // Predicated region
        $region21: #{tpu_custom_call.1} parent=11 // pred_check
          %p199 = pneg %p131
        $region22: #{tpu_custom_call.1} parent=11 // pred_check_branch
          %201 = sbr.rel (%p199) target = $region24
        $region23: #{tpu_custom_call.1} parent=11 // pred_region
          _
        $region24: #{tpu_custom_call.1} parent=11 // pred_fallthru
          _
        // Predicated region
        $region25: #{tpu_custom_call.1} parent=11 // pred_check
          %p202 = pneg %p152
        $region26: #{tpu_custom_call.1} parent=11 // pred_check_branch
          %204 = sbr.rel (%p202) target = $region28
        $region27: #{tpu_custom_call.1} parent=11 // pred_region
          _
        $region28: #{tpu_custom_call.1} parent=11 // pred_fallthru
          _
      $region12: #{tpu_custom_call.1} parent=5 // pred_fallthru
        _
      %p205 = scmp.lt.s32.totalorder %s16, 2
      // Predicated region
      $region29: #{tpu_custom_call.1} parent=5 // pred_check
        %p206 = pneg %p205
      $region30: #{tpu_custom_call.1} parent=5 // pred_check_branch
        %208 = sbr.rel (%p206) target = $region32
      $region31: #{tpu_custom_call.1} parent=5 // pred_region
        // Predicated region
        $region33: #{tpu_custom_call.1} parent=31 // pred_check
          %p209 = pneg %p36
        $region34: #{tpu_custom_call.1} parent=31 // pred_check_branch
          %211 = sbr.rel (%p209) target = $region36
        $region35: #{tpu_custom_call.1} parent=31 // pred_region
          %s212 = smul.u32 2, %s16
          %s213 = ssub.s32 3, %s212
          %p214 = scmp.lt.s32.totalorder %s213, 2
          %s215 = scalar_select %p214, %s213, 2
          %s216 = smul.u32 64, %s215
          %p217 = scmp.lt.s32.totalorder %s212, 2
          %s218 = scalar_select %p217, %s212, 2
          %s219 = smul.addr %s218, 4
          %s220 = scalar_lea.vmem %s0, %s219
          %s221 = smul.u32 2, %s16
          %s222 = ssub.s32 3, %s221
          %p223 = scmp.lt.s32.totalorder %s222, 2
          %s224 = scalar_select %p223, %s222, 2
          %s225 = smul.u32 64, %s224
        $region36: #{tpu_custom_call.1} parent=31 // pred_fallthru
          _
        // Predicated region
        $region37: #{tpu_custom_call.1} parent=31 // pred_check
          %p226 = pneg %p62
        $region38: #{tpu_custom_call.1} parent=31 // pred_check_branch
          %228 = sbr.rel (%p226) target = $region40
        $region39: #{tpu_custom_call.1} parent=31 // pred_region
          %s229 = smul.u32 2, %s16
          %p230 = scmp.lt.s32.totalorder %s229, 3
          %s231 = scalar_select %p230, %s229, 3
          %s232 = smul.addr %s231, 4
          %s233 = scalar_lea.vmem %s1, %s232
          %s234 = smul.u32 2, %s16
        $region40: #{tpu_custom_call.1} parent=31 // pred_fallthru
          _
      $region32: #{tpu_custom_call.1} parent=5 // pred_fallthru
        _
      %p235 = scmp.le.s32.totalorder 1, %s16
      %p236 = scmp.lt.s32.totalorder %s16, 3
      %p237 = pnand %p235, %p236
      %p238 = pneg %p237
      // Predicated region
      $region41: #{tpu_custom_call.1} parent=5 // pred_check
        _
      $region42: #{tpu_custom_call.1} parent=5 // pred_check_branch
        %240 = sbr.rel (%p237) target = $region44
      $region43: #{tpu_custom_call.1} parent=5 // pred_region
        %s241 = ssub.s32 %s16, 1
        %s242 = smul.u32 2, %s21
        %s243 = ssub.s32 3, %s242
        %p244 = scmp.lt.s32.totalorder %s243, 2
        %s245 = scalar_select %p244, %s243, 2
        %s246 = smul.u32 64, %s245
        %p247 = scmp.lt.s32.totalorder %s242, 2
        %s248 = scalar_select %p247, %s242, 2
        %s249 = smul.addr %s248, 4
        %s250 = scalar_lea.vmem %s0, %s249
        %p251 = pneg %p42
        %p252 = pneg %p39
        %s253 = smul.u32 2, %s21
        %p254 = scmp.lt.s32.totalorder %s253, 3
        %s255 = scalar_select %p254, %s253, 3
        %s256 = smul.addr %s255, 4
        %s257 = scalar_lea.vmem %s1, %s256
        %p258 = pneg %p68
        %p259 = pneg %p65
        %p260 = pneg %p89
        %p261 = pneg %p86
        %p262 = pneg %p110
        %p263 = pneg %p107
        %p264 = pneg %p131
        %p265 = pneg %p128
        %p266 = pneg %p152
        %p267 = pneg %p149
        %p268 = pneg %p178
        %p269 = pneg %p175
        %s270 = sand.u32 %s165, 1
        %s271 = scalar_lea.sflag [#allocation4], %s270
        %s272 = sand.u32 %s165, 1
        %s273 = smul.addr %s272, 8
        %s274 = scalar_lea.vmem [#allocation3], %s273
        %s275 = smul.u32 2, %s21
        %s276 = ssub.s32 3, %s275
        %p277 = scmp.lt.s32.totalorder %s276, 2
        %s278 = scalar_select %p277, %s276, 2
        %s279 = smul.u32 64, %s278
        %p280 = scmp.lt.s32.totalorder %s275, 2
        %s281 = scalar_select %p280, %s275, 2
        %s282 = smul.addr %s281, 4
        %s283 = scalar_lea.vmem %s0, %s282
        %s284 = smul.u32 2, %s21
        %s285 = ssub.s32 3, %s284
        %p286 = scmp.lt.s32.totalorder %s285, 2
        %s287 = scalar_select %p286, %s285, 2
        %s288 = smul.u32 64, %s287
        %s289 = smul.u32 2, %s21
        %p290 = scmp.lt.s32.totalorder %s289, 3
        %s291 = scalar_select %p290, %s289, 3
        %s292 = smul.addr %s291, 4
        %s293 = scalar_lea.vmem %s1, %s292
        %s294 = smul.u32 2, %s21
        %v296 = vld [vmem:[%s283] sm:$0xf]
        %v297 = vld [vmem:[%s283 + $0x4] sm:$0xf]
        %v298 = vld [vmem:[%s2] sm:$0xf]
        %v299 = vld [vmem:[%s2 + $0x4] sm:$0xf]
        %v300 = vld [vmem:[%s2 + $0x8] sm:$0xf]
        %v301 = vld [vmem:[%s2 + $0xc] sm:$0xf]
        %v302 = vld [vmem:[%s3] sm:$0x1]
        %v304 = vlaneseq
        %v305 = vshrl.u32 %v304, 7
        %v306 = vsub.s32 0, %v305
        %v307 = vrot.slane %v302, %v306
        %v311 = vunpack.c.l.b16 %v296
        %v312 = vunpack.c.l.b16 %v297
        %v313 = vpack.c.b16 %v312, %v311
        %v318 = vunpack.c.l.b16 %v298
        %v319 = vunpack.c.l.b16 %v299
        %v320 = vunpack.c.l.b16 %v300
        %v321 = vunpack.c.l.b16 %v301
        %v322 = vpack.c.b16 %v319, %v318
        %v323 = vpack.c.b16 %v321, %v320
        %vm326 = vcmask 261120
        %v328 = vsel %vm326, %v313, 0
        %330 = vmatprep.subr.bf16.mxu0 0
        %331 = vmatpush1.bf16.msra.mxu0 %v322
        %332 = vmatprep.subr.bf16.mxu0 0
        %333 = vmatpush1.bf16.msra.mxu0 %v323
        %334 = vmatprep.subr.bf16.mxu0 0
        %335 = vmatpush1.bf16.msra.mxu0 0
        %336 = vmatprep.subr.bf16.mxu0 0
        %337 = vmatpush1.bf16.msra.mxu0 0
        %338 = vmatprep.subr.bf16.mxu0 0
        %339 = vmatpush1.bf16.msra.mxu0 0
        %340 = vmatprep.subr.bf16.mxu0 0
        %341 = vmatpush1.bf16.msra.mxu0 0
        %342 = vmatprep.subr.bf16.mxu0 0
        %343 = vmatpush1.bf16.msra.mxu0 0
        %344 = vmatprep.subr.bf16.mxu0 0
        %345 = vmatpush1.bf16.msra.mxu0 0
        %346 = vmatprep.subr.bf16.mxu0 0
        %347 = vmatpush1.bf16.msra.mxu0 0
        %348 = vmatprep.subr.bf16.mxu0 0
        %349 = vmatpush1.bf16.msra.mxu0 0
        %350 = vmatprep.subr.bf16.mxu0 0
        %351 = vmatpush1.bf16.msra.mxu0 0
        %352 = vmatprep.subr.bf16.mxu0 0
        %353 = vmatpush1.bf16.msra.mxu0 0
        %354 = vmatprep.subr.bf16.mxu0 0
        %355 = vmatpush1.bf16.msra.mxu0 0
        %356 = vmatprep.subr.bf16.mxu0 0
        %357 = vmatpush1.bf16.msra.mxu0 0
        %358 = vmatprep.subr.bf16.mxu0 0
        %359 = vmatpush1.bf16.msra.mxu0 0
        %360 = vmatprep.subr.bf16.mxu0 0
        %361 = vmatpush1.bf16.msra.mxu0 0
        %362 = vmatprep.mubr.bf16.mxu0 0
        %363 = vmatmul.mubr.bf16.gmra.mrb[0].mxu0 %v328
        %v364 = vpop.f32.mrb[0].mxu0
        %v365 = vadd.f32 %v307, %v364
        %v366 = vpop.f32.mrb[0].mxu0
        %v367 = vpop.f32.mrb[0].mxu0
        %v368 = vadd.f32 %v307, %v367
        %v369 = vpop.f32.mrb[0].mxu0
        %370 = vdwg.mxu0
        %v371 = vmul.f32 %v365, 0.5
        %v372 = vmul.f32 %v368, 0.5
        %v373 = vmul.f32 %v365, 0.044715
        %v374 = vmul.f32 %v368, 0.044715
        %v375 = vmul.f32 %v373, %v365
        %v376 = vmul.f32 %v374, %v368
        %v377 = vmul.f32 %v375, %v365
        %v378 = vmul.f32 %v376, %v368
        %v379 = vadd.f32 %v365, %v377
        %v380 = vadd.f32 %v368, %v378
        %v381 = vmul.f32 %v379, 0.7978846
        %v382 = vmul.f32 %v380, 0.7978846
        %v383 = vtanh.pop %v381
        %v384 = vtanh.pop %v382
        %v385 = vadd.f32 %v383, 1.0
        %v386 = vadd.f32 %v384, 1.0
        %v387 = vmul.f32 %v371, %v385
        %v388 = vmul.f32 %v372, %v386
        %v389 = vld [vmem:[%s4] sm:$0x1]
        %v391 = vlaneseq
        %v392 = vshrl.u32 %v391, 7
        %v393 = vsub.s32 0, %v392
        %v394 = vrot.slane %v389, %v393
        %v396 = vmul.f32 %v387, %v394
        %v397 = vmul.f32 %v388, %v394
        %398 = vadd.xlane.f32.xlu0 %v396
        %v399 = vpop.xlane.xlu0 %398
        %400 = vadd.xlane.f32.xlu0 %v397
        %v401 = vpop.xlane.xlu0 %400
        %s402 = sld [smem:[#allocation2]]
        %v403 = vstv %s402
        %v404 = vadd.f32 %v399, %v403
        %v405 = vadd.f32 %v401, %v403
        %s406 = smul.u32 %s21, 16
        %v407 = vlaneseq
        %v408 = vshrl.u32 %v407, 7
        %v409 = vadd.s32 %v408, 8
        %v410 = vstv %s406
        %v411 = vadd.s32 %v410, %v408
        %v412 = vadd.s32 %v410, %v409
        %vm413 = vcmp.lt.s32.totalorder %v411, 18
        %vm414 = vcmp.lt.s32.totalorder %v412, 18
        %v415 = vsel %vm413, %v404, 0.0
        %v416 = vsel %vm414, %v405, 0.0
        %v417 = vld [vmem:[%s293] sm:$0xf]
        %v418 = vld [vmem:[%s293 + $0x4] sm:$0xf]
        %v419 = vunpack.c.l.bf16 %v417
        %v420 = vunpack.c.l.bf16 %v418
        %v421 = vmax.f32 %v415, 0.0
        %v422 = vmax.f32 %v416, 0.0
        %v423 = vand.u32 2147483647, %v415
        %v424 = vand.u32 2147483647, %v416
        %v425 = vsub.f32 0.0, %v423
        %v426 = vsub.f32 0.0, %v424
        %v427 = vmul.f32 %v425, 1.442695
        %v428 = vpow.pop %v427
        %v429 = vmul.f32 %v426, 1.442695
        %v430 = vpow.pop %v429
        %v431 = vadd.f32 %v428, 1.0
        %v432 = vadd.f32 %v430, 1.0
        %v433 = vlog2.pop %v431
        %v434 = vmul.f32 %v433, 0.6931472
        %v435 = vlog2.pop %v432
        %v436 = vmul.f32 %v435, 0.6931472
        %v437 = vadd.f32 %v421, %v434
        %v438 = vadd.f32 %v422, %v436
        %v439 = vmul.f32 %v419, %v437
        %v440 = vmul.f32 %v420, %v438
        %v441 = vmul.f32 %v419, %v415
        %v442 = vmul.f32 %v420, %v416
        %445 = vrot.lane.b32.xlu0 %v441, 127
        %v446 = vpop.permute.xlu0 %445
        %447 = vrot.lane.b32.xlu0 %v442, 127
        %v448 = vpop.permute.xlu0 %447
        %v451 = vsub.f32 %v439, %v446
        %v452 = vsub.f32 %v440, %v448
        %vm453 = vcmask 7168
        %v454 = vsel %vm453, %v451, 0.0
        %v455 = vsel %vm453, %v452, 0.0
        %v456 = vadd.f32 %v454, %v455
        %457 = vadd.xlane.f32.xlu0 %v456
        %v458 = vpop.xlane.xlu0 %457
        %v459 = vrot.slane %v458, 4
        %v460 = vadd.f32 %v458, %v459
        %v461 = vrot.slane %v460, 2
        %v462 = vadd.f32 %v460, %v461
        %v463 = vrot.slane %v462, 1
        %v464 = vadd.f32 %v462, %v463
        %s465 = vtos %v464
        %v466 = vstv %s465
        %467 = vst [vmem:[%s274] sm:$0xff] %v466
        %s468 = sand.u32 %s165, 1
        %s469 = scalar_lea.sflag [#allocation4], %s468
        %s470 = sand.u32 %s165, 1
        %s471 = smul.addr %s470, 8
        %s472 = scalar_lea.vmem [#allocation3], %s471
        // Predicated region
        $region45: #{tpu_custom_call.1} parent=43 // pred_check
          %p473 = pneg %p175
        $region46: #{tpu_custom_call.1} parent=43 // pred_check_branch
          %475 = sbr.rel (%p473) target = $region48
        $region47: #{tpu_custom_call.1} parent=43 // pred_region
          %s477 = ssub.s32 128, 128
          %478 = vsyncadd %s469, %s477
          %s479 = smul.addr %s21, 128
          %s480 = scalar_lea.hbm %s6, %s479
          %s482 = sshll.u32 %s472, 4
          %s483 = int_to_ptr.vmem [resolvable:$true] %s482
          %485 = dma.vmem_to_hbm [thread:$0]  %s483, 128, %s480, %s469
        $region48: #{tpu_custom_call.1} parent=43 // pred_fallthru
          _
      $region44: #{tpu_custom_call.1} parent=5 // pred_fallthru
        _
      %p486 = scmp.le.s32.totalorder 2, %s16
      // Predicated region
      $region49: #{tpu_custom_call.1} parent=5 // pred_check
        %p487 = pneg %p486
      $region50: #{tpu_custom_call.1} parent=5 // pred_check_branch
        %489 = sbr.rel (%p487) target = $region52
      $region51: #{tpu_custom_call.1} parent=5 // pred_region
        %s490 = ssub.s32 %s16, 2
        // Predicated region
        $region53: #{tpu_custom_call.1} parent=51 // pred_check
          %p491 = pneg %p181
        $region54: #{tpu_custom_call.1} parent=51 // pred_check_branch
          %493 = sbr.rel (%p491) target = $region56
        $region55: #{tpu_custom_call.1} parent=51 // pred_region
          %s494 = sand.u32 %s166, 1
          %s495 = scalar_lea.sflag [#allocation4], %s494
          %s496 = sand.u32 %s166, 1
          %s497 = smul.addr %s496, 8
          %s498 = scalar_lea.vmem [#allocation3], %s497
          %499 = dma.done %s495, 128
        $region56: #{tpu_custom_call.1} parent=51 // pred_fallthru
          _
      $region52: #{tpu_custom_call.1} parent=5 // pred_fallthru
        _
    $region6: #{tpu_custom_call.1} parent=1 // loop_footer
      %s20 = sadd.s32 1, %s16
    $region7: #{tpu_custom_call.1} parent=1 // loop_footer_branch
      %15 = sbr.rel target = $region3
    $region8: #{tpu_custom_call.1} parent=1 // loop_exit
      _
    %500 = vsyncpa [#allocation4], 1
    %s501 = scalar_lea.sflag [#allocation4], 1
    %502 = vsyncpa %s501, 1

</llo_original>
